<compile_context>
chip_gen: v5e
topology: v5e:2x2
jax: 0.10.0
libtpu: 0.0.40
codegen_flags: <defaults>
</compile_context>

<pallas_src>
import functools

import jax
import jax.numpy as jnp
from jax import lax
from jax.experimental import pallas as pl
from jax.experimental.pallas import tpu as pltpu

_NEG_BIG = -1e30


# --------------------------------------------------------------------------- #
# Pass 1: normalize once, emit MXU-dtype embeddings + f32 per-row diagonals.   #
# --------------------------------------------------------------------------- #
def _prep_kernel(e_ref, c1_ref, c2_ref, en_ref, c1n_ref, c2n_ref, diag_ref,
                 *, inv_temp):
    def norm(ref):
        # F.normalize(x, dim=1): x / max(||x||, 1e-12) == x * rsqrt(max(||x||^2, 1e-24))
        x = ref[...].astype(jnp.float32)
        ss = jnp.sum(x * x, axis=1, keepdims=True)
        return x * lax.rsqrt(jnp.maximum(ss, 1e-24))

    e, c1, c2 = norm(e_ref), norm(c1_ref), norm(c2_ref)
    en_ref[...] = e.astype(en_ref.dtype)
    c1n_ref[...] = c1.astype(c1n_ref.dtype)
    c2n_ref[...] = c2.astype(c2n_ref.dtype)
    # Diagonal logits (f32, exact) for each pair: ecg<->cmr1, ecg<->cmr2, cmr1<->cmr2.
    diag_ref[0] = jnp.sum(e * c1, axis=1, keepdims=True) * inv_temp
    diag_ref[1] = jnp.sum(e * c2, axis=1, keepdims=True) * inv_temp
    diag_ref[2] = jnp.sum(c1 * c2, axis=1, keepdims=True) * inv_temp


# --------------------------------------------------------------------------- #
# Pass 2: B^2 logits + two-sided online logsumexp over (row tiles, col tiles). #
# --------------------------------------------------------------------------- #
def _clip_loss_kernel(e_ref, c1_ref, c1t_ref, c2t_ref,
                      logits_ref, row_m_ref, row_s_ref, col_m_ref, col_s_ref,
                      *, inv_temp):
    j = pl.program_id(1)

    e = e_ref[...]        # (tm, D)  MXU dtype, rows of ecg
    c1 = c1_ref[...]      # (tm, D)  rows of cmr1 (LHS of pair 3)
    c1t = c1t_ref[...]    # (D, tn)  columns of cmr1 (pre-transposed)
    c2t = c2t_ref[...]    # (D, tn)  columns of cmr2 (pre-transposed)

    pairs = ((e, c1t, True),     # ecg  <-> cmr1  (logits returned)
             (e, c2t, False),    # ecg  <-> cmr2
             (c1, c2t, False))   # cmr1 <-> cmr2

    for p, (lhs, rhs, emit) in enumerate(pairs):
        logits = jnp.dot(lhs, rhs, preferred_element_type=jnp.float32) * inv_temp
        if emit:
            logits_ref[...] = logits   # store block immediately (short live range)

        # ---- row-wise online logsumexp; state lives in the (3, tm, 1) output
        # blocks, which stay resident across j (index map independent of j). ----
        @pl.when(j == 0)
        def _(p=p):
            row_m_ref[p] = jnp.full(row_m_ref.shape[1:], _NEG_BIG, jnp.float32)
            row_s_ref[p] = jnp.zeros(row_s_ref.shape[1:], jnp.float32)

        m_old = row_m_ref[p]                                         # (tm, 1)
        m_new = jnp.maximum(m_old, jnp.max(logits, axis=1, keepdims=True))
        pexp = jnp.exp(logits - m_new)                               # the only B^2 exp
        row_s_ref[p] = (row_s_ref[p] * jnp.exp(m_old - m_new)
                        + jnp.sum(pexp, axis=1, keepdims=True))
        row_m_ref[p] = m_new

        # ---- column-wise partial (m, s) for THIS row tile, reusing pexp:
        #   sum_r exp(L[r,c] - g) = sum_r pexp[r,c] * exp(m_new[r] - g),  g >= L. ----
        g = jnp.max(m_new, keepdims=True)                            # (1, 1)
        w = jnp.exp(m_new - g)                                       # (tm, 1)
        col_m_ref[p] = jnp.broadcast_to(g, (1, col_m_ref.shape[-1]))
        col_s_ref[p] = jnp.sum(pexp * w, axis=0, keepdims=True)      # (1, tn)


# --------------------------------------------------------------------------- #
# Tiling helpers (generation-aware VMEM budget).                               #
# --------------------------------------------------------------------------- #
def _vmem_capacity_bytes():
    try:
        cap = int(pltpu.get_tpu_info().vmem_capacity_bytes)
        if cap >= 16 * 1024 * 1024:
            return cap
    except Exception:
        pass
    return 64 * 1024 * 1024   # conservative fallback: legal on every generation


def _pick_row_tile(n, candidates=(256, 128, 8)):
    for c in candidates:
        if n >= c and n % c == 0:
            return c
    return n


def _select_tiles(B, D, operand_bytes, budget):
    """Pick (tm, tn); prefer tn == B (columns DMA'd exactly once), then large tm."""
    def vmem_need(tm, tn):
        return (2 * 2 * (tm + tn) * D * operand_bytes   # double-buffered row + col inputs
                + 2 * tm * tn * 4                       # logits output block
                + 2 * 2 * 3 * tm * 128 * 4              # row m/s blocks (lane padded)
                + 2 * 2 * 3 * 8 * max(tn, 128) * 4)     # col m/s blocks (sublane padded)

    tn_cands = [B] + [c for c in (4096, 2048, 1024, 512, 256, 128)
                      if c < B and B % c == 0]
    tm_cands = [c for c in (512, 256, 128, 8) if c <= B and B % c == 0] + [B]
    for tn in tn_cands:
        for tm in tm_cands:
            if vmem_need(tm, tn) <= budget:
                return tm, tn
    # TODO(synk): pad B to a multiple of 128 (masking padded rows/cols out of the
    # LSE/diag) instead of falling back to full-extent tiles for awkward batch sizes.
    return B, B


# --------------------------------------------------------------------------- #
# Public wrapper.                                                              #
# --------------------------------------------------------------------------- #
def multimodal_clip_loss(ecg_out, cmr1_out, cmr2_out, *, temperature,
                         lambda_ecg_cmr1=0.33, lambda_ecg_cmr2=0.33,
                         lambda_cmr1_cmr2=0.33, matmul_dtype=jnp.bfloat16):
    """Returns (total_loss, logits_ecg_cmr1, labels), matching the PyTorch module."""
    B, D = ecg_out.shape
    total = lambda_ecg_cmr1 + lambda_ecg_cmr2 + lambda_cmr1_cmr2
    lams = jnp.asarray([lambda_ecg_cmr1 / total, lambda_ecg_cmr2 / total,
                        lambda_cmr1_cmr2 / total], dtype=jnp.float32)
    inv_temp = 1.0 / float(temperature)

    operand_bytes = jnp.dtype(matmul_dtype).itemsize
    cap = _vmem_capacity_bytes()                # 128 MiB on v5e/v6e, 64 MiB on v7x
    vmem_limit = int(cap * 3 // 4)              # headroom for compiler-internal scratch
    tm, tn = _select_tiles(B, D, operand_bytes, vmem_limit)
    ni, nj = B // tm, B // tn
    tp = _pick_row_tile(B)

    # ---- pass 1: normalize once; emit MXU-dtype embeddings + f32 diagonals ----
    e_n, c1_n, c2_n, diag = pl.pallas_call(
        functools.partial(_prep_kernel, inv_temp=inv_temp),
        grid_spec=pltpu.PrefetchScalarGridSpec(
            num_scalar_prefetch=0,
            grid=(B // tp,),
            in_specs=[pl.BlockSpec((tp, D), lambda i: (i, 0)),
                      pl.BlockSpec((tp, D), lambda i: (i, 0)),
                      pl.BlockSpec((tp, D), lambda i: (i, 0))],
            out_specs=(pl.BlockSpec((tp, D), lambda i: (i, 0)),
                       pl.BlockSpec((tp, D), lambda i: (i, 0)),
                       pl.BlockSpec((tp, D), lambda i: (i, 0)),
                       pl.BlockSpec((3, tp, 1), lambda i: (0, i, 0))),
        ),
        out_shape=(jax.ShapeDtypeStruct((B, D), matmul_dtype),
                   jax.ShapeDtypeStruct((B, D), matmul_dtype),
                   jax.ShapeDtypeStruct((B, D), matmul_dtype),
                   jax.ShapeDtypeStruct((3, B, 1), jnp.float32)),
        compiler_params=pltpu.CompilerParams(
            dimension_semantics=("parallel",),
            vmem_limit_bytes=vmem_limit),
    )(ecg_out, cmr1_out, cmr2_out)

    # Column operands pre-transposed (cheap O(B*D) layout plumbing): the MXU then
    # sees a plain (tm, D) x (D, tn) matmul and column blocks are lane-dense in tn.
    c1_t = jnp.transpose(c1_n)
    c2_t = jnp.transpose(c2_n)

    # ---- pass 2: B^2 logits + two-sided online logsumexp ----
    col_reads = 1 if nj == 1 else ni
    cost = pl.CostEstimate(
        flops=int(6 * B * B * D),
        transcendentals=int(3 * B * B + 6 * B * nj),
        bytes_accessed=int(operand_bytes * (2 + 2 * col_reads) * B * D + 4 * B * B),
    )

    logits, row_m, row_s, col_m, col_s = pl.pallas_call(
        functools.partial(_clip_loss_kernel, inv_temp=inv_temp),
        grid_spec=pltpu.PrefetchScalarGridSpec(
            num_scalar_prefetch=0,
            grid=(ni, nj),
            in_specs=[pl.BlockSpec((tm, D), lambda i, j: (i, 0)),   # ecg rows
                      pl.BlockSpec((tm, D), lambda i, j: (i, 0)),   # cmr1 rows
                      pl.BlockSpec((D, tn), lambda i, j: (0, j)),   # cmr1 cols (pre-T)
                      pl.BlockSpec((D, tn), lambda i, j: (0, j))],  # cmr2 cols (pre-T)
            out_specs=(pl.BlockSpec((tm, tn), lambda i, j: (i, j)),       # logits ecg<->cmr1
                       pl.BlockSpec((3, tm, 1), lambda i, j: (0, i, 0)),  # row max state
                       pl.BlockSpec((3, tm, 1), lambda i, j: (0, i, 0)),  # row sum state
                       pl.BlockSpec((3, 1, tn), lambda i, j: (i, 0, j)),  # col max partials
                       pl.BlockSpec((3, 1, tn), lambda i, j: (i, 0, j))), # col sum partials
        ),
        out_shape=(jax.ShapeDtypeStruct((B, B), jnp.float32),
                   jax.ShapeDtypeStruct((3, B, 1), jnp.float32),
                   jax.ShapeDtypeStruct((3, B, 1), jnp.float32),
                   jax.ShapeDtypeStruct((3 * ni, 1, B), jnp.float32),
                   jax.ShapeDtypeStruct((3 * ni, 1, B), jnp.float32)),
        compiler_params=pltpu.CompilerParams(
            # Nothing is carried across row tiles -> axis i can use both v7x cores.
            dimension_semantics=("parallel", "arbitrary"),
            vmem_limit_bytes=vmem_limit),
        cost_estimate=cost,
    )(e_n, c1_n, c1_t, c2_t)

    # ---- tiny O(B) finalize in XLA ----
    lse_row = row_m[:, :, 0] + jnp.log(row_s[:, :, 0])                  # (3, B)
    cm = col_m.reshape(ni, 3, B)
    cs = col_s.reshape(ni, 3, B)
    m_col = jnp.max(cm, axis=0)                                         # (3, B)
    s_col = jnp.sum(cs * jnp.exp(cm - m_col[None]), axis=0)             # (3, B)
    lse_col = m_col + jnp.log(s_col)
    diag_sum = jnp.sum(diag[:, :, 0], axis=1)                           # (3,)
    per_pair = (jnp.sum(lse_row, axis=1) + jnp.sum(lse_col, axis=1)
                - 2.0 * diag_sum) * (0.5 / B)
    loss = jnp.sum(lams * per_pair)

    labels = jnp.arange(B, dtype=jnp.int32)
    return loss, logits, labels


# --------------------------------------------------------------------------- #
# Pure-JAX reference mirroring the PyTorch module, and a small self-test.      #
# --------------------------------------------------------------------------- #
def _reference(ecg, cmr1, cmr2, temperature, l1, l2, l3):
    total = l1 + l2 + l3
    l1, l2, l3 = l1 / total, l2 / total, l3 / total

    def norm(x):
        n = jnp.sqrt(jnp.sum(x * x, axis=1, keepdims=True))
        return x / jnp.maximum(n, 1e-12)

    e, c1, c2 = norm(ecg), norm(cmr1), norm(cmr2)
    B = e.shape[0]
    idx = jnp.arange(B)

    def ce(logits):
        lse = jax.nn.logsumexp(logits, axis=1)
        return jnp.mean(lse - logits[idx, idx])

    def pair(a, b, lam):
        lg = (a @ b.T) / temperature
        return lg, lam * (ce(lg) + ce(lg.T)) / 2

    lg1, lo1 = pair(e, c1, l1)
    _, lo2 = pair(e, c2, l2)
    _, lo3 = pair(c1, c2, l3)
    return lo1 + lo2 + lo3, lg1, idx


if __name__ == "__main__":
    key = jax.random.PRNGKey(0)
    k1, k2, k3 = jax.random.split(key, 3)
    B, D = 8, 32
    ecg = jax.random.normal(k1, (B, D), dtype=jnp.float32)
    cmr1 = jax.random.normal(k2, (B, D), dtype=jnp.float32)
    cmr2 = jax.random.normal(k3, (B, D), dtype=jnp.float32)

    temperature = 0.1
    ref_loss, ref_logits, ref_labels = _reference(
        ecg, cmr1, cmr2, temperature, 0.33, 0.33, 0.33)

    # Exact path (f32 MXU operands): tight match against the reference.
    loss32, logits32, labels = multimodal_clip_loss(
        ecg, cmr1, cmr2, temperature=temperature, matmul_dtype=jnp.float32)
    jax.block_until_ready((loss32, logits32, labels))
    assert jnp.allclose(loss32, ref_loss, atol=1e-4, rtol=1e-5), (loss32, ref_loss)
    assert jnp.allclose(logits32, ref_logits, atol=1e-4, rtol=1e-5)
    assert jnp.array_equal(labels, ref_labels.astype(labels.dtype))

    # Default fast path (bf16 MXU operands, f32 accumulation & softmax/normalize).
    loss_bf, logits_bf, _ = multimodal_clip_loss(
        ecg, cmr1, cmr2, temperature=temperature)
    jax.block_until_ready((loss_bf, logits_bf))
    assert jnp.isfinite(loss_bf)
    assert jnp.abs(loss_bf - ref_loss) < 0.08, (loss_bf, ref_loss)
    assert jnp.allclose(logits_bf, ref_logits, atol=0.08), \
        float(jnp.max(jnp.abs(logits_bf - ref_logits)))

    print("KERNEL_OK")
</pallas_src>

<mosaic_0001>
module attributes {stable_mosaic.version = 11 : i64} {
  func.func @_prep_kernel(%arg0: i32, %arg1: memref<8x32xf32, #tpu.memory_space<vmem>>, %arg2: memref<8x32xf32, #tpu.memory_space<vmem>>, %arg3: memref<8x32xf32, #tpu.memory_space<vmem>>, %arg4: memref<8x32xf32, #tpu.memory_space<vmem>>, %arg5: memref<8x32xf32, #tpu.memory_space<vmem>>, %arg6: memref<8x32xf32, #tpu.memory_space<vmem>>, %arg7: memref<3x8x1xf32, #tpu.memory_space<vmem>>) attributes {dimension_semantics = [#tpu.dimension_semantics<parallel>], iteration_bounds = array<i64: 1>, scalar_prefetch = 0 : i64, scratch_operands = 0 : i64, tpu.core_type = #tpu.core_type<tc>, window_params = [{transform_indices = @transform_0, window_bounds = array<i64: 8, 32>}, {transform_indices = @transform_1, window_bounds = array<i64: 8, 32>}, {transform_indices = @transform_2, window_bounds = array<i64: 8, 32>}, {transform_indices = @transform_3, window_bounds = array<i64: 8, 32>}, {transform_indices = @transform_4, window_bounds = array<i64: 8, 32>}, {transform_indices = @transform_5, window_bounds = array<i64: 8, 32>}, {transform_indices = @transform_6, window_bounds = array<i64: 3, 8, 1>}]} {
    %c0 = arith.constant 0 : index
    %c0_0 = arith.constant 0 : index
    %0 = vector.load %arg1[%c0, %c0_0] : memref<8x32xf32, #tpu.memory_space<vmem>>, vector<8x32xf32>
    %1 = arith.mulf %0, %0 : vector<8x32xf32>
    %cst = arith.constant dense<0.000000e+00> : vector<8xf32>
    %2 = vector.multi_reduction <add>, %1, %cst [1] : vector<8x32xf32> to vector<8xf32>
    %3 = vector.shape_cast %2 : vector<8xf32> to vector<8x1xf32>
    %cst_1 = arith.constant 1.000000e-24 : f32
    %4 = vector.broadcast %cst_1 : f32 to vector<8x1xf32>
    %5 = arith.maximumf %3, %4 : vector<8x1xf32>
    %6 = math.rsqrt %5 : vector<8x1xf32>
    %7 = vector.broadcast %6 : vector<8x1xf32> to vector<8x32xf32>
    %8 = arith.mulf %0, %7 : vector<8x32xf32>
    %c0_2 = arith.constant 0 : index
    %c0_3 = arith.constant 0 : index
    %9 = vector.load %arg2[%c0_2, %c0_3] : memref<8x32xf32, #tpu.memory_space<vmem>>, vector<8x32xf32>
    %10 = arith.mulf %9, %9 : vector<8x32xf32>
    %cst_4 = arith.constant dense<0.000000e+00> : vector<8xf32>
    %11 = vector.multi_reduction <add>, %10, %cst_4 [1] : vector<8x32xf32> to vector<8xf32>
    %12 = vector.shape_cast %11 : vector<8xf32> to vector<8x1xf32>
    %cst_5 = arith.constant 1.000000e-24 : f32
    %13 = vector.broadcast %cst_5 : f32 to vector<8x1xf32>
    %14 = arith.maximumf %12, %13 : vector<8x1xf32>
    %15 = math.rsqrt %14 : vector<8x1xf32>
    %16 = vector.broadcast %15 : vector<8x1xf32> to vector<8x32xf32>
    %17 = arith.mulf %9, %16 : vector<8x32xf32>
    %c0_6 = arith.constant 0 : index
    %c0_7 = arith.constant 0 : index
    %18 = vector.load %arg3[%c0_6, %c0_7] : memref<8x32xf32, #tpu.memory_space<vmem>>, vector<8x32xf32>
    %19 = arith.mulf %18, %18 : vector<8x32xf32>
    %cst_8 = arith.constant dense<0.000000e+00> : vector<8xf32>
    %20 = vector.multi_reduction <add>, %19, %cst_8 [1] : vector<8x32xf32> to vector<8xf32>
    %21 = vector.shape_cast %20 : vector<8xf32> to vector<8x1xf32>
    %cst_9 = arith.constant 1.000000e-24 : f32
    %22 = vector.broadcast %cst_9 : f32 to vector<8x1xf32>
    %23 = arith.maximumf %21, %22 : vector<8x1xf32>
    %24 = math.rsqrt %23 : vector<8x1xf32>
    %25 = vector.broadcast %24 : vector<8x1xf32> to vector<8x32xf32>
    %26 = arith.mulf %18, %25 : vector<8x32xf32>
    %c0_10 = arith.constant 0 : index
    %c0_11 = arith.constant 0 : index
    %27 = vector.load %arg4[%c0_10, %c0_11] : memref<8x32xf32, #tpu.memory_space<vmem>>, vector<8x32xf32>
    tpu.vector_store %arg4[%c0_10, %c0_11], %8 {strides = array<i32>} : memref<8x32xf32, #tpu.memory_space<vmem>>, vector<8x32xf32>,
    %c0_12 = arith.constant 0 : index
    %c0_13 = arith.constant 0 : index
    %28 = vector.load %arg5[%c0_12, %c0_13] : memref<8x32xf32, #tpu.memory_space<vmem>>, vector<8x32xf32>
    tpu.vector_store %arg5[%c0_12, %c0_13], %17 {strides = array<i32>} : memref<8x32xf32, #tpu.memory_space<vmem>>, vector<8x32xf32>,
    %c0_14 = arith.constant 0 : index
    %c0_15 = arith.constant 0 : index
    %29 = vector.load %arg6[%c0_14, %c0_15] : memref<8x32xf32, #tpu.memory_space<vmem>>, vector<8x32xf32>
    tpu.vector_store %arg6[%c0_14, %c0_15], %26 {strides = array<i32>} : memref<8x32xf32, #tpu.memory_space<vmem>>, vector<8x32xf32>,
    %30 = arith.mulf %8, %17 : vector<8x32xf32>
    %cst_16 = arith.constant dense<0.000000e+00> : vector<8xf32>
    %31 = vector.multi_reduction <add>, %30, %cst_16 [1] : vector<8x32xf32> to vector<8xf32>
    %32 = vector.shape_cast %31 : vector<8xf32> to vector<8x1xf32>
    %cst_17 = arith.constant 1.000000e+01 : f32
    %33 = vector.broadcast %cst_17 : f32 to vector<8x1xf32>
    %34 = arith.mulf %32, %33 : vector<8x1xf32>
    %c0_18 = arith.constant 0 : index
    %c0_19 = arith.constant 0 : index
    %c0_20 = arith.constant 0 : index
    %35 = vector.load %arg7[%c0_18, %c0_19, %c0_20] : memref<3x8x1xf32, #tpu.memory_space<vmem>>, vector<1x8x1xf32>
    %36 = vector.shape_cast %35 : vector<1x8x1xf32> to vector<8x1xf32>
    %37 = vector.shape_cast %34 : vector<8x1xf32> to vector<1x8x1xf32>
    tpu.vector_store %arg7[%c0_18, %c0_19, %c0_20], %37 {strides = array<i32>} : memref<3x8x1xf32, #tpu.memory_space<vmem>>, vector<1x8x1xf32>,
    %38 = arith.mulf %8, %26 : vector<8x32xf32>
    %cst_21 = arith.constant dense<0.000000e+00> : vector<8xf32>
    %39 = vector.multi_reduction <add>, %38, %cst_21 [1] : vector<8x32xf32> to vector<8xf32>
    %40 = vector.shape_cast %39 : vector<8xf32> to vector<8x1xf32>
    %cst_22 = arith.constant 1.000000e+01 : f32
    %41 = vector.broadcast %cst_22 : f32 to vector<8x1xf32>
    %42 = arith.mulf %40, %41 : vector<8x1xf32>
    %c1 = arith.constant 1 : index
    %c0_23 = arith.constant 0 : index
    %c0_24 = arith.constant 0 : index
    %43 = vector.load %arg7[%c1, %c0_23, %c0_24] : memref<3x8x1xf32, #tpu.memory_space<vmem>>, vector<1x8x1xf32>
    %44 = vector.shape_cast %43 : vector<1x8x1xf32> to vector<8x1xf32>
    %45 = vector.shape_cast %42 : vector<8x1xf32> to vector<1x8x1xf32>
    tpu.vector_store %arg7[%c1, %c0_23, %c0_24], %45 {strides = array<i32>} : memref<3x8x1xf32, #tpu.memory_space<vmem>>, vector<1x8x1xf32>,
    %46 = arith.mulf %17, %26 : vector<8x32xf32>
    %cst_25 = arith.constant dense<0.000000e+00> : vector<8xf32>
    %47 = vector.multi_reduction <add>, %46, %cst_25 [1] : vector<8x32xf32> to vector<8xf32>
    %48 = vector.shape_cast %47 : vector<8xf32> to vector<8x1xf32>
    %cst_26 = arith.constant 1.000000e+01 : f32
    %49 = vector.broadcast %cst_26 : f32 to vector<8x1xf32>
    %50 = arith.mulf %48, %49 : vector<8x1xf32>
    %c2 = arith.constant 2 : index
    %c0_27 = arith.constant 0 : index
    %c0_28 = arith.constant 0 : index
    %51 = vector.load %arg7[%c2, %c0_27, %c0_28] : memref<3x8x1xf32, #tpu.memory_space<vmem>>, vector<1x8x1xf32>
    %52 = vector.shape_cast %51 : vector<1x8x1xf32> to vector<8x1xf32>
    %53 = vector.shape_cast %50 : vector<8x1xf32> to vector<1x8x1xf32>
    tpu.vector_store %arg7[%c2, %c0_27, %c0_28], %53 {strides = array<i32>} : memref<3x8x1xf32, #tpu.memory_space<vmem>>, vector<1x8x1xf32>,
    return
  }
  func.func @transform_0(%arg0: i32) -> (i32, i32) {
    %c0_i32 = arith.constant 0 : i32
    %c0_i32_0 = arith.constant 0 : i32
    return %arg0, %c0_i32 : i32, i32
  }
  func.func @transform_1(%arg0: i32) -> (i32, i32) {
    %c0_i32 = arith.constant 0 : i32
    %c0_i32_0 = arith.constant 0 : i32
    return %arg0, %c0_i32 : i32, i32
  }
  func.func @transform_2(%arg0: i32) -> (i32, i32) {
    %c0_i32 = arith.constant 0 : i32
    %c0_i32_0 = arith.constant 0 : i32
    return %arg0, %c0_i32 : i32, i32
  }
  func.func @transform_3(%arg0: i32) -> (i32, i32) {
    %c0_i32 = arith.constant 0 : i32
    %c0_i32_0 = arith.constant 0 : i32
    return %arg0, %c0_i32 : i32, i32
  }
  func.func @transform_4(%arg0: i32) -> (i32, i32) {
    %c0_i32 = arith.constant 0 : i32
    %c0_i32_0 = arith.constant 0 : i32
    return %arg0, %c0_i32 : i32, i32
  }
  func.func @transform_5(%arg0: i32) -> (i32, i32) {
    %c0_i32 = arith.constant 0 : i32
    %c0_i32_0 = arith.constant 0 : i32
    return %arg0, %c0_i32 : i32, i32
  }
  func.func @transform_6(%arg0: i32) -> (i32, i32, i32) {
    %c0_i32 = arith.constant 0 : i32
    %c0_i32_0 = arith.constant 0 : i32
    %c0_i32_1 = arith.constant 0 : i32
    return %c0_i32, %arg0, %c0_i32_0 : i32, i32, i32
  }
}

</mosaic_0001>

<llo_original>
// kernel: tpu_custom_call.1
$region0: #{tpu_custom_call.1}
  #allocation0 [shape = 'u32[]', space=smem, size = 0x4, offset = 0x4, fixed_abs, tag = 'smem constant byte address 0x4 - core index']
  #allocation1 [shape = 'u32[72,128]{1,0:T(1,128)}', space=vmem, size = 0x9000, scoped, tag = 'internal scratch']
  %s0 = inlined_call_operand.hbm [shape: f32[8,32], index: 0, kind: input, shape index: {}]
  %s1 = inlined_call_operand.hbm [shape: f32[8,32], index: 1, kind: input, shape index: {}]
  %s2 = inlined_call_operand.hbm [shape: f32[8,32], index: 2, kind: input, shape index: {}]
  %s3 = inlined_call_operand.hbm [shape: f32[8,32], index: 3, kind: output, shape index: {0}]
  %s4 = inlined_call_operand.hbm [shape: f32[8,32], index: 4, kind: output, shape index: {1}]
  %s5 = inlined_call_operand.hbm [shape: f32[8,32], index: 5, kind: output, shape index: {2}]
  %s6 = inlined_call_operand.vmem [shape: f32[3,8,1], index: 6, kind: output, shape index: {3}]
  %7 = xla_tuple %s3, %s4, %s5, %s6
  %s8 = sld [smem:[#allocation0]]
  $region58: #{tpu_custom_call.1} parent=0
    _
  %s10 = ssub.s32 1, %s8
  %s11 = scalar_select 0, %s10, %s8
  $region1: #{tpu_custom_call.1} parent=0
    #allocation2 [shape = 'u8[4096]{0}', space=vmem, size = 0x1000, scoped, tag = 'input window, operand 0, single buffered']
    #allocation3 [shape = 's32[1]{0}', space=sflag, size = 0x4, scoped, tag = 'scoped memory for tpu_custom_call.1']
    #allocation4 [shape = 's32[1]{0}', space=sflag, size = 0x4, scoped, tag = 'scoped memory for tpu_custom_call.1']
    #allocation5 [shape = 'u8[4096]{0}', space=vmem, size = 0x1000, scoped, tag = 'input window, operand 1, single buffered']
    #allocation6 [shape = 's32[1]{0}', space=sflag, size = 0x4, scoped, tag = 'scoped memory for tpu_custom_call.1']
    #allocation7 [shape = 'u8[4096]{0}', space=vmem, size = 0x1000, scoped, tag = 'input window, operand 2, single buffered']
    #allocation8 [shape = 'u8[4096]{0}', space=vmem, size = 0x1000, scoped, tag = 'output window, operand 0, single buffered']
    #allocation9 [shape = 'u8[4096]{0}', space=vmem, size = 0x1000, scoped, tag = 'output window, operand 1, single buffered']
    #allocation10 [shape = 's32[1]{0}', space=sflag, size = 0x4, scoped, tag = 'scoped memory for tpu_custom_call.1']
    #allocation11 [shape = 'u8[4096]{0}', space=vmem, size = 0x1000, scoped, tag = 'output window, operand 2, single buffered']
    %12 = vsyncpa [#allocation3], 0
    %13 = vsyncpa [#allocation6], 0
    %14 = vsyncpa [#allocation4], 0
    %15 = vsyncpa [#allocation10], 0
    // Predicated region
    $region2: #{tpu_custom_call.1} parent=1 // pred_check
      _
    $region3: #{tpu_custom_call.1} parent=1 // pred_check_branch
      %17 = sbr.rel (0) target = $region5
    $region4: #{tpu_custom_call.1} parent=1 // pred_region
      %19 = vsyncadd [#allocation3], 0
      %s21 = sshll.u32 %s0, 4
      %s22 = int_to_ptr.hbm [resolvable:$true] %s21
      %s23 = sshll.u32 [#allocation2], 4
      %s24 = int_to_ptr.vmem [resolvable:$true] %s23
      %26 = dma.hbm_to_vmem [thread:$0]  %s22, 128, %s24, [#allocation3]
    $region5: #{tpu_custom_call.1} parent=1 // pred_fallthru
      _
    // Predicated region
    $region6: #{tpu_custom_call.1} parent=1 // pred_check
      _
    $region7: #{tpu_custom_call.1} parent=1 // pred_check_branch
      %28 = sbr.rel (0) target = $region9
    $region8: #{tpu_custom_call.1} parent=1 // pred_region
      %30 = vsyncadd [#allocation6], 0
      %s32 = sshll.u32 %s1, 4
      %s33 = int_to_ptr.hbm [resolvable:$true] %s32
      %s34 = sshll.u32 [#allocation5], 4
      %s35 = int_to_ptr.vmem [resolvable:$true] %s34
      %37 = dma.hbm_to_vmem [thread:$0]  %s33, 128, %s35, [#allocation6]
    $region9: #{tpu_custom_call.1} parent=1 // pred_fallthru
      _
    // Predicated region
    $region10: #{tpu_custom_call.1} parent=1 // pred_check
      _
    $region11: #{tpu_custom_call.1} parent=1 // pred_check_branch
      %39 = sbr.rel (0) target = $region13
    $region12: #{tpu_custom_call.1} parent=1 // pred_region
      %41 = vsyncadd [#allocation6], 0
      %s43 = sshll.u32 %s2, 4
      %s44 = int_to_ptr.hbm [resolvable:$true] %s43
      %s45 = sshll.u32 [#allocation7], 4
      %s46 = int_to_ptr.vmem [resolvable:$true] %s45
      %48 = dma.hbm_to_vmem [thread:$0]  %s44, 128, %s46, [#allocation6]
    $region13: #{tpu_custom_call.1} parent=1 // pred_fallthru
      _
    // Predicated region
    $region14: #{tpu_custom_call.1} parent=1 // pred_check
      _
    $region15: #{tpu_custom_call.1} parent=1 // pred_check_branch
      %50 = sbr.rel (0) target = $region17
    $region16: #{tpu_custom_call.1} parent=1 // pred_region
      %52 = dma.done [#allocation3], 128
    $region17: #{tpu_custom_call.1} parent=1 // pred_fallthru
      _
    // Predicated region
    $region18: #{tpu_custom_call.1} parent=1 // pred_check
      _
    $region19: #{tpu_custom_call.1} parent=1 // pred_check_branch
      %54 = sbr.rel (0) target = $region21
    $region20: #{tpu_custom_call.1} parent=1 // pred_region
      %56 = dma.done [#allocation6], 128
    $region21: #{tpu_custom_call.1} parent=1 // pred_fallthru
      _
    // Predicated region
    $region22: #{tpu_custom_call.1} parent=1 // pred_check
      _
    $region23: #{tpu_custom_call.1} parent=1 // pred_check_branch
      %58 = sbr.rel (0) target = $region25
    $region24: #{tpu_custom_call.1} parent=1 // pred_region
      %60 = dma.done [#allocation6], 128
    $region25: #{tpu_custom_call.1} parent=1 // pred_fallthru
      _
    %v61 = vld [vmem:[#allocation2] sm:$0xff]
    %v62 = vmul.f32 %v61, %v61
    %vm63 = vcmask 261120
    %v64 = vsel %vm63, %v62, 0.0
    %65 = vadd.xlane.f32.xlu0 %v64
    %v66 = vpop.xlane.xlu0 %65
    %v67 = vmax.f32 %v66, 1e-24
    %v68 = vrsqrt.pop %v67
    %v69 = vmul.f32 %v68, %v67
    %v70 = vmul.f32 %v69, %v68
    %v71 = vmul.f32 0.5, %v70
    %v72 = vsub.f32 1.5, %v71
    %v73 = vmul.f32 %v68, %v72
    %vm74 = vweird.f32 %v67
    %vm75 = vweird.f32 %v68
    %vm76 = vmor %vm74, %vm75
    %v77 = vsel %vm76, %v68, %v73
    %v78 = vmul.f32 %v61, %v77
    %v79 = vld [vmem:[#allocation5] sm:$0xff]
    %v80 = vmul.f32 %v79, %v79
    %v81 = vsel %vm63, %v80, 0.0
    %82 = vadd.xlane.f32.xlu0 %v81
    %v83 = vpop.xlane.xlu0 %82
    %v84 = vmax.f32 %v83, 1e-24
    %v85 = vrsqrt.pop %v84
    %v86 = vmul.f32 %v85, %v84
    %v87 = vmul.f32 %v86, %v85
    %v88 = vmul.f32 0.5, %v87
    %v89 = vsub.f32 1.5, %v88
    %v90 = vmul.f32 %v85, %v89
    %vm91 = vweird.f32 %v84
    %vm92 = vweird.f32 %v85
    %vm93 = vmor %vm91, %vm92
    %v94 = vsel %vm93, %v85, %v90
    %v95 = vmul.f32 %v79, %v94
    %v96 = vld [vmem:[#allocation7] sm:$0xff]
    %v97 = vmul.f32 %v96, %v96
    %v98 = vsel %vm63, %v97, 0.0
    %99 = vadd.xlane.f32.xlu0 %v98
    %v100 = vpop.xlane.xlu0 %99
    %v101 = vmax.f32 %v100, 1e-24
    %v102 = vrsqrt.pop %v101
    %v103 = vmul.f32 %v102, %v101
    %v104 = vmul.f32 %v103, %v102
    %v105 = vmul.f32 0.5, %v104
    %v106 = vsub.f32 1.5, %v105
    %v107 = vmul.f32 %v102, %v106
    %vm108 = vweird.f32 %v101
    %vm109 = vweird.f32 %v102
    %vm110 = vmor %vm108, %vm109
    %v111 = vsel %vm110, %v102, %v107
    %v112 = vmul.f32 %v96, %v111
    %113 = vst.msk [vmem:[#allocation8] sm:$0xff] %vm63, %v78
    %114 = vst.msk [vmem:[#allocation9] sm:$0xff] %vm63, %v95
    %115 = vst.msk [vmem:[#allocation11] sm:$0xff] %vm63, %v112
    %v116 = vmul.f32 %v78, %v95
    %v117 = vsel %vm63, %v116, 0.0
    %118 = vadd.xlane.f32.xlu0 %v117
    %v119 = vpop.xlane.xlu0 %118
    %v120 = vmul.f32 %v119, 10.0
    %vm121 = vcmask 7168
    %122 = vst.msk [vmem:[%s6] sm:$0xff] %vm121, %v120
    %v123 = vmul.f32 %v78, %v112
    %v124 = vsel %vm63, %v123, 0.0
    %125 = vadd.xlane.f32.xlu0 %v124
    %v126 = vpop.xlane.xlu0 %125
    %v127 = vmul.f32 %v126, 10.0
    %s128 = scalar_lea.vmem %s6, 8
    %129 = vst.msk [vmem:[%s128] sm:$0xff] %vm121, %v127
    %v130 = vmul.f32 %v95, %v112
    %v131 = vsel %vm63, %v130, 0.0
    %132 = vadd.xlane.f32.xlu0 %v131
    %v133 = vpop.xlane.xlu0 %132
    %v134 = vmul.f32 %v133, 10.0
    %s135 = scalar_lea.vmem %s6, 16
    %136 = vst.msk [vmem:[%s135] sm:$0xff] %vm121, %v134
    // Predicated region
    $region26: #{tpu_custom_call.1} parent=1 // pred_check
      _
    $region27: #{tpu_custom_call.1} parent=1 // pred_check_branch
      %138 = sbr.rel (0) target = $region29
    $region28: #{tpu_custom_call.1} parent=1 // pred_region
      %140 = vsyncadd [#allocation4], 0
      %s142 = sshll.u32 [#allocation8], 4
      %s143 = int_to_ptr.vmem [resolvable:$true] %s142
      %s144 = sshll.u32 %s3, 4
      %s145 = int_to_ptr.hbm [resolvable:$true] %s144
      %147 = dma.vmem_to_hbm [thread:$0]  %s143, 128, %s145, [#allocation4]
    $region29: #{tpu_custom_call.1} parent=1 // pred_fallthru
      _
    // Predicated region
    $region30: #{tpu_custom_call.1} parent=1 // pred_check
      _
    $region31: #{tpu_custom_call.1} parent=1 // pred_check_branch
      %149 = sbr.rel (0) target = $region33
    $region32: #{tpu_custom_call.1} parent=1 // pred_region
      %151 = vsyncadd [#allocation10], 0
      %s153 = sshll.u32 [#allocation9], 4
      %s154 = int_to_ptr.vmem [resolvable:$true] %s153
      %s155 = sshll.u32 %s4, 4
      %s156 = int_to_ptr.hbm [resolvable:$true] %s155
      %158 = dma.vmem_to_hbm [thread:$0]  %s154, 128, %s156, [#allocation10]
    $region33: #{tpu_custom_call.1} parent=1 // pred_fallthru
      _
    // Predicated region
    $region34: #{tpu_custom_call.1} parent=1 // pred_check
      _
    $region35: #{tpu_custom_call.1} parent=1 // pred_check_branch
      %160 = sbr.rel (0) target = $region37
    $region36: #{tpu_custom_call.1} parent=1 // pred_region
      %162 = vsyncadd [#allocation10], 0
      %s164 = sshll.u32 [#allocation11], 4
      %s165 = int_to_ptr.vmem [resolvable:$true] %s164
      %s166 = sshll.u32 %s5, 4
      %s167 = int_to_ptr.hbm [resolvable:$true] %s166
      %169 = dma.vmem_to_hbm [thread:$0]  %s165, 128, %s167, [#allocation10]
    $region37: #{tpu_custom_call.1} parent=1 // pred_fallthru
      _
    // Predicated region
    $region38: #{tpu_custom_call.1} parent=1 // pred_check
      _
    $region39: #{tpu_custom_call.1} parent=1 // pred_check_branch
      %171 = sbr.rel (0) target = $region41
    $region40: #{tpu_custom_call.1} parent=1 // pred_region
      _
    $region41: #{tpu_custom_call.1} parent=1 // pred_fallthru
      _
    // Predicated region
    $region42: #{tpu_custom_call.1} parent=1 // pred_check
      _
    $region43: #{tpu_custom_call.1} parent=1 // pred_check_branch
      %173 = sbr.rel (0) target = $region45
    $region44: #{tpu_custom_call.1} parent=1 // pred_region
      %175 = dma.done [#allocation4], 128
    $region45: #{tpu_custom_call.1} parent=1 // pred_fallthru
      _
    // Predicated region
    $region46: #{tpu_custom_call.1} parent=1 // pred_check
      _
    $region47: #{tpu_custom_call.1} parent=1 // pred_check_branch
      %177 = sbr.rel (0) target = $region49
    $region48: #{tpu_custom_call.1} parent=1 // pred_region
      %179 = dma.done [#allocation10], 128
    $region49: #{tpu_custom_call.1} parent=1 // pred_fallthru
      _
    // Predicated region
    $region50: #{tpu_custom_call.1} parent=1 // pred_check
      _
    $region51: #{tpu_custom_call.1} parent=1 // pred_check_branch
      %181 = sbr.rel (0) target = $region53
    $region52: #{tpu_custom_call.1} parent=1 // pred_region
      %183 = dma.done [#allocation10], 128
    $region53: #{tpu_custom_call.1} parent=1 // pred_fallthru
      _
    // Predicated region
    $region54: #{tpu_custom_call.1} parent=1 // pred_check
      _
    $region55: #{tpu_custom_call.1} parent=1 // pred_check_branch
      %185 = sbr.rel (0) target = $region57
    $region56: #{tpu_custom_call.1} parent=1 // pred_region
      _
    $region57: #{tpu_custom_call.1} parent=1 // pred_fallthru
      _
    %186 = vsyncpa [#allocation3], 1
    %187 = vsyncpa [#allocation6], 1
    %188 = vsyncpa [#allocation4], 1
    %189 = vsyncpa [#allocation10], 1

</llo_original>
